<compile_context>
chip_gen: v7x
topology: tpu7x:2x2x1
jax: 0.10.0
libtpu: 0.0.40
codegen_flags: <defaults>
</compile_context>

<pallas_src>
import functools

import jax
import jax.numpy as jnp
from jax import lax
from jax.experimental import pallas as pl
from jax.experimental.pallas import tpu as pltpu


def _predictor_kernel(x_ref, w_ref, b_ref, g_ref, beta_ref, o_ref, *,
                      k_size, pad, h_dim, eps, out_groups, matmul_dtype):
    # x_ref   : (bb, T, E)                     raw (unpadded) input block
    # w_ref   : (E, K*H)                       conv weights, column block k = W_k
    # b_ref   : (1, H)   g_ref/beta_ref (1, H) conv bias / layernorm gamma, beta
    # o_ref   : (bb, T // out_groups, out_groups * H)
    bb, t_len, e_dim = x_ref.shape
    m = bb * t_len

    xf = x_ref[...].reshape(m, e_dim)            # merge leading dims: free
    if matmul_dtype is not None:
        xf = xf.astype(matmul_dtype)

    # Single fused MXU push for all K taps: (M, E) @ (E, K*H) -> (M, K*H).
    z = jnp.dot(xf, w_ref[...], preferred_element_type=jnp.float32)

    # Tap combine: out[t] = bias + sum_k z_k[t + k - pad].  The time shift is a
    # sublane roll of the flat (M, H) slab; rows whose source frame falls into
    # the zero padding (or a neighbouring batch element after flattening) are
    # masked to zero.  No padded input copy, no im2col slab.
    t_idx = lax.broadcasted_iota(jnp.int32, (m, h_dim), 0) % t_len
    acc = jnp.zeros((m, h_dim), jnp.float32)
    for k in range(k_size):
        zk = z[:, k * h_dim:(k + 1) * h_dim]
        shift = pad - k
        if shift != 0:
            zk = pltpu.roll(zk, shift % m, axis=0)
            if shift > 0:
                zk = jnp.where(t_idx >= shift, zk, 0.0)
            else:
                zk = jnp.where(t_idx <= t_len - 1 + shift, zk, 0.0)
        acc = acc + zk
    acc = acc + b_ref[...].astype(jnp.float32)

    # LayerNorm over the hidden dim (biased variance, eps inside rsqrt) + ReLU.
    mean = jnp.mean(acc, axis=-1, keepdims=True)
    cent = acc - mean
    var = jnp.mean(cent * cent, axis=-1, keepdims=True)
    y = cent * lax.rsqrt(var + eps)
    y = y * g_ref[...].astype(jnp.float32) + beta_ref[...].astype(jnp.float32)
    y = jnp.maximum(y, 0.0)
    # TODO(synk): Dropout is identity in eval mode and is omitted.

    y = y.astype(o_ref.dtype)
    o_ref[...] = y.reshape(bb, t_len // out_groups, out_groups * h_dim)


def _pick_batch_block(B, T, E, H, K, *, itemsize=4,
                      vmem_budget_bytes=20 * 1024 * 1024):
    """Batch-block size from a lane/sublane-padding-aware VMEM footprint model."""
    def lanes(n):  # last dim pads to a multiple of 128 lanes
        return -(-n // 128) * 128

    def subs(n):   # second-minor dim pads to a multiple of 8 sublanes
        return -(-n // 8) * 8

    per_elem = (
        2 * subs(T) * lanes(E) * itemsize           # double-buffered input block
        + 2 * subs(T) * lanes(H) * itemsize         # double-buffered output block
        + 3 * subs(T) * lanes(K * H) * itemsize     # z + shifted tap copies
        + 6 * subs(T) * lanes(H) * itemsize         # acc/cent/mask/y live f32 slabs
    )
    bb_cap = max(1, vmem_budget_bytes // per_elem)
    if B >= 2:
        # Keep >= 2 grid steps so the "parallel" grid axis shards across both
        # TensorCores on v7x (single-TC v5e/v6e are unaffected).
        bb_cap = max(1, min(bb_cap, B // 2))

    # Prefer a divisor of B (no batch padding / extra HBM copy) if a good one exists.
    best_div = 1
    for cand in range(min(bb_cap, B), 0, -1):
        if B % cand == 0:
            best_div = cand
            break
    if 2 * best_div >= bb_cap:
        return best_div
    # Otherwise balance the work across ceil(B / bb_cap) padded steps.
    n_steps = -(-B // bb_cap)
    return -(-B // n_steps)


def predictor_block(x, conv_w, conv_b, ln_gamma, ln_beta, *,
                    padding=1, eps=1e-5, batch_block=None, matmul_dtype=None,
                    lane_dense_out=True, vmem_budget_bytes=20 * 1024 * 1024):
    """x: (B, T, E) channels-last. conv_w: (H, E, K) torch Conv1d layout."""
    B, T, E = x.shape
    H, E2, K = conv_w.shape
    assert E2 == E
    t_out = T + 2 * padding - K + 1
    # TODO(synk): the roll-based tap combine assumes a "same"-length conv
    # (kernel_size == 2*padding + 1), which is how the module configures it.
    assert t_out == T, "only kernel_size == 2*padding + 1 is supported"

    bb = batch_block if batch_block is not None else _pick_batch_block(
        B, T, E, H, K, vmem_budget_bytes=vmem_budget_bytes)
    n_steps = -(-B // bb)
    b_pad = n_steps * bb
    x_in = x if b_pad == B else jnp.pad(x, ((0, b_pad - B), (0, 0), (0, 0)))

    # Conv weights packed once as (E, K*H): column block k is W_k[e, h] = conv_w[h, e, k].
    w_mat = jnp.transpose(conv_w, (1, 2, 0)).reshape(E, K * H)
    if matmul_dtype is not None:
        w_mat = w_mat.astype(matmul_dtype)
    b_row = conv_b.reshape(1, H)
    g_row = ln_gamma.reshape(1, H)
    beta_row = ln_beta.reshape(1, H)

    # Lane-dense output: pack g = 128 // H consecutive frames into the lane dim
    # so the output block's last dim is a full 128 lanes (unmasked vst).
    groups = 1
    if lane_dense_out and H < 128 and 128 % H == 0 and T % (128 // H) == 0:
        groups = 128 // H

    def run(g):
        kern = functools.partial(
            _predictor_kernel, k_size=K, pad=padding, h_dim=H, eps=eps,
            out_groups=g, matmul_dtype=matmul_dtype)
        out = pl.pallas_call(
            kern,
            out_shape=jax.ShapeDtypeStruct((b_pad, T // g, g * H), x.dtype),
            grid_spec=pltpu.PrefetchScalarGridSpec(
                num_scalar_prefetch=0,
                grid=(n_steps,),
                in_specs=[
                    pl.BlockSpec((bb, T, E), lambda i: (i, 0, 0)),
                    pl.BlockSpec((E, K * H), lambda i: (0, 0)),
                    pl.BlockSpec((1, H), lambda i: (0, 0)),
                    pl.BlockSpec((1, H), lambda i: (0, 0)),
                    pl.BlockSpec((1, H), lambda i: (0, 0)),
                ],
                out_specs=pl.BlockSpec((bb, T // g, g * H), lambda i: (i, 0, 0)),
            ),
            compiler_params=pltpu.CompilerParams(
                dimension_semantics=("parallel",),
                vmem_limit_bytes=32 * 1024 * 1024,
            ),
        )(x_in, w_mat, b_row, g_row, beta_row)
        out = out.reshape(b_pad, T, H)   # contiguous: free in XLA
        return out[:B] if b_pad != B else out

    if groups > 1:
        try:
            return run(groups)
        except Exception:
            # TODO(synk): the packed (M, H) -> (bb, T/g, g*H) store relayout can
            # be rejected by older Mosaic; fall back to the (bb, T, H) block.
            pass
    return run(1)


def _reference(x, conv_w, conv_b, ln_gamma, ln_beta, *, padding=1, eps=1e-5):
    B, T, E = x.shape
    H, _, K = conv_w.shape
    t_out = T + 2 * padding - K + 1
    x_pad = jnp.pad(x, ((0, 0), (padding, padding), (0, 0))).astype(jnp.float32)
    w = jnp.transpose(conv_w, (2, 1, 0)).astype(jnp.float32)  # (K, E, H)
    acc = jnp.zeros((B, t_out, H), jnp.float32)
    for k in range(K):
        acc += jnp.einsum('bte,eh->bth', x_pad[:, k:k + t_out, :], w[k])
    acc += conv_b.astype(jnp.float32)
    mean = acc.mean(-1, keepdims=True)
    var = ((acc - mean) ** 2).mean(-1, keepdims=True)
    y = (acc - mean) / jnp.sqrt(var + eps)
    y = y * ln_gamma.astype(jnp.float32) + ln_beta.astype(jnp.float32)
    return jnp.maximum(y, 0.0).astype(x.dtype)


if __name__ == "__main__":
    # Small shapes consistent with the module's forward.
    B, T = 2, 16
    embed_dim, hidden_dim, kernel_size = 32, 32, 3

    key = jax.random.PRNGKey(0)
    kx, kw, kb, kg, kbe = jax.random.split(key, 5)

    x = jax.random.normal(kx, (B, T, embed_dim), dtype=jnp.float32)
    conv_w = jax.random.normal(kw, (hidden_dim, embed_dim, kernel_size),
                               dtype=jnp.float32) * 0.1
    conv_b = jax.random.normal(kb, (hidden_dim,), dtype=jnp.float32) * 0.1
    ln_gamma = 1.0 + 0.1 * jax.random.normal(kg, (hidden_dim,), dtype=jnp.float32)
    ln_beta = 0.1 * jax.random.normal(kbe, (hidden_dim,), dtype=jnp.float32)

    out = predictor_block(x, conv_w, conv_b, ln_gamma, ln_beta)
    out = jax.block_until_ready(out)

    ref = _reference(x, conv_w, conv_b, ln_gamma, ln_beta)
    assert out.shape == (B, T, hidden_dim)
    assert jnp.allclose(out, ref, atol=1e-4, rtol=1e-4)
    print("KERNEL_OK")
</pallas_src>

<mosaic_0001>
module attributes {stable_mosaic.version = 11 : i64} {
  func.func @_predictor_kernel(%arg0: i32, %arg1: memref<1x16x32xf32, #tpu.memory_space<vmem>>, %arg2: memref<32x96xf32, #tpu.memory_space<vmem>>, %arg3: memref<1x32xf32, #tpu.memory_space<vmem>>, %arg4: memref<1x32xf32, #tpu.memory_space<vmem>>, %arg5: memref<1x32xf32, #tpu.memory_space<vmem>>, %arg6: memref<1x4x128xf32, #tpu.memory_space<vmem>>) attributes {dimension_semantics = [#tpu.dimension_semantics<parallel>], iteration_bounds = array<i64: 2>, scalar_prefetch = 0 : i64, scratch_operands = 0 : i64, tpu.core_type = #tpu.core_type<tc>, window_params = [{transform_indices = @transform_0, window_bounds = array<i64: 1, 16, 32>}, {pipeline_mode = #tpu.pipeline_mode<synchronous>, transform_indices = @transform_1, window_bounds = array<i64: 32, 96>}, {pipeline_mode = #tpu.pipeline_mode<synchronous>, transform_indices = @transform_2, window_bounds = array<i64: 1, 32>}, {pipeline_mode = #tpu.pipeline_mode<synchronous>, transform_indices = @transform_3, window_bounds = array<i64: 1, 32>}, {pipeline_mode = #tpu.pipeline_mode<synchronous>, transform_indices = @transform_4, window_bounds = array<i64: 1, 32>}, {transform_indices = @transform_5, window_bounds = array<i64: 1, 4, 128>}]} {
    %c0 = arith.constant 0 : index
    %c0_0 = arith.constant 0 : index
    %c0_1 = arith.constant 0 : index
    %0 = vector.load %arg1[%c0, %c0_0, %c0_1] : memref<1x16x32xf32, #tpu.memory_space<vmem>>, vector<1x16x32xf32>
    %1 = vector.shape_cast %0 : vector<1x16x32xf32> to vector<16x32xf32>
    %c0_2 = arith.constant 0 : index
    %c0_3 = arith.constant 0 : index
    %2 = vector.load %arg2[%c0_2, %c0_3] : memref<32x96xf32, #tpu.memory_space<vmem>>, vector<32x96xf32>
    %cst = arith.constant dense<0.000000e+00> : vector<16x96xf32>
    %3 = tpu.matmul %1, %2, %cst {dimension_numbers = #tpu.dot_dimension_numbers<[1], [0], [0], [1], [0, 0, 1, 1], [], []>} : vector<16x32xf32>, vector<32x96xf32>, vector<16x96xf32> -> vector<16x96xf32>
    %4 = tpu.iota {dimensions = array<i32: 0>} : vector<16x32xi32>
    %c16_i32 = arith.constant 16 : i32
    %c0_i32 = arith.constant 0 : i32
    %5 = arith.cmpi eq, %c16_i32, %c0_i32 : i32
    %c1_i32 = arith.constant 1 : i32
    %6 = arith.select %5, %c1_i32, %c16_i32 : i32
    %7 = vector.broadcast %6 : i32 to vector<16x32xi32>
    %8 = arith.remsi %4, %7 : vector<16x32xi32>
    %c0_i32_4 = arith.constant 0 : i32
    %9 = vector.broadcast %c0_i32_4 : i32 to vector<16x32xi32>
    %10 = arith.cmpi ne, %8, %9 : vector<16x32xi32>
    %c0_i32_5 = arith.constant 0 : i32
    %11 = vector.broadcast %c0_i32_5 : i32 to vector<16x32xi32>
    %12 = arith.cmpi slt, %8, %11 : vector<16x32xi32>
    %c0_i32_6 = arith.constant 0 : i32
    %13 = arith.cmpi slt, %6, %c0_i32_6 : i32
    %14 = vector.broadcast %13 : i1 to vector<16x32xi1>
    %15 = vector.broadcast %14 : vector<16x32xi1> to vector<16x32xi1>
    %16 = arith.xori %12, %15 : vector<16x32xi1>
    %17 = arith.andi %16, %10 : vector<16x32xi1>
    %18 = vector.broadcast %6 : i32 to vector<16x32xi32>
    %19 = arith.addi %8, %18 : vector<16x32xi32>
    %20 = arith.select %17, %19, %8 : vector<16x32xi1>, vector<16x32xi32>
    %cst_7 = arith.constant 0.000000e+00 : f32
    %21 = vector.broadcast %cst_7 : f32 to vector<16x32xf32>
    %22 = vector.extract_strided_slice %3 {offsets = [0, 0], sizes = [16, 32], strides = [1, 1]} : vector<16x96xf32> to vector<16x32xf32>
    %c1_i32_8 = arith.constant 1 : i32
    %23 = tpu.dynamic_rotate %22 by %c1_i32_8 dim 0 : vector<16x32xf32>, i32 -> vector<16x32xf32>
    %c1_i32_9 = arith.constant 1 : i32
    %24 = vector.broadcast %c1_i32_9 : i32 to vector<16x32xi32>
    %25 = arith.cmpi sge, %20, %24 : vector<16x32xi32>
    %cst_10 = arith.constant 0.000000e+00 : f32
    %26 = vector.broadcast %cst_10 : f32 to vector<16x32xf32>
    %27 = arith.select %25, %23, %26 : vector<16x32xi1>, vector<16x32xf32>
    %28 = arith.addf %21, %27 : vector<16x32xf32>
    %29 = vector.extract_strided_slice %3 {offsets = [0, 32], sizes = [16, 32], strides = [1, 1]} : vector<16x96xf32> to vector<16x32xf32>
    %30 = arith.addf %28, %29 : vector<16x32xf32>
    %31 = vector.extract_strided_slice %3 {offsets = [0, 64], sizes = [16, 32], strides = [1, 1]} : vector<16x96xf32> to vector<16x32xf32>
    %c15_i32 = arith.constant 15 : i32
    %32 = tpu.dynamic_rotate %31 by %c15_i32 dim 0 : vector<16x32xf32>, i32 -> vector<16x32xf32>
    %c14_i32 = arith.constant 14 : i32
    %33 = vector.broadcast %c14_i32 : i32 to vector<16x32xi32>
    %34 = arith.cmpi sle, %20, %33 : vector<16x32xi32>
    %cst_11 = arith.constant 0.000000e+00 : f32
    %35 = vector.broadcast %cst_11 : f32 to vector<16x32xf32>
    %36 = arith.select %34, %32, %35 : vector<16x32xi1>, vector<16x32xf32>
    %37 = arith.addf %30, %36 : vector<16x32xf32>
    %c0_12 = arith.constant 0 : index
    %c0_13 = arith.constant 0 : index
    %38 = vector.load %arg3[%c0_12, %c0_13] : memref<1x32xf32, #tpu.memory_space<vmem>>, vector<1x32xf32>
    %39 = vector.broadcast %38 : vector<1x32xf32> to vector<16x32xf32>
    %40 = arith.addf %37, %39 : vector<16x32xf32>
    %cst_14 = arith.constant dense<0.000000e+00> : vector<16xf32>
    %41 = vector.multi_reduction <add>, %40, %cst_14 [1] : vector<16x32xf32> to vector<16xf32>
    %42 = vector.shape_cast %41 : vector<16xf32> to vector<16x1xf32>
    %cst_15 = arith.constant 3.200000e+01 : f32
    %43 = vector.broadcast %cst_15 : f32 to vector<16x1xf32>
    %44 = arith.divf %42, %43 : vector<16x1xf32>
    %45 = vector.broadcast %44 : vector<16x1xf32> to vector<16x32xf32>
    %46 = arith.subf %40, %45 : vector<16x32xf32>
    %47 = arith.mulf %46, %46 : vector<16x32xf32>
    %cst_16 = arith.constant dense<0.000000e+00> : vector<16xf32>
    %48 = vector.multi_reduction <add>, %47, %cst_16 [1] : vector<16x32xf32> to vector<16xf32>
    %49 = vector.shape_cast %48 : vector<16xf32> to vector<16x1xf32>
    %cst_17 = arith.constant 3.200000e+01 : f32
    %50 = vector.broadcast %cst_17 : f32 to vector<16x1xf32>
    %51 = arith.divf %49, %50 : vector<16x1xf32>
    %cst_18 = arith.constant 9.99999974E-6 : f32
    %52 = vector.broadcast %cst_18 : f32 to vector<16x1xf32>
    %53 = arith.addf %51, %52 : vector<16x1xf32>
    %54 = math.rsqrt %53 : vector<16x1xf32>
    %55 = vector.broadcast %54 : vector<16x1xf32> to vector<16x32xf32>
    %56 = arith.mulf %46, %55 : vector<16x32xf32>
    %c0_19 = arith.constant 0 : index
    %c0_20 = arith.constant 0 : index
    %57 = vector.load %arg4[%c0_19, %c0_20] : memref<1x32xf32, #tpu.memory_space<vmem>>, vector<1x32xf32>
    %58 = vector.broadcast %57 : vector<1x32xf32> to vector<16x32xf32>
    %59 = arith.mulf %56, %58 : vector<16x32xf32>
    %c0_21 = arith.constant 0 : index
    %c0_22 = arith.constant 0 : index
    %60 = vector.load %arg5[%c0_21, %c0_22] : memref<1x32xf32, #tpu.memory_space<vmem>>, vector<1x32xf32>
    %61 = vector.broadcast %60 : vector<1x32xf32> to vector<16x32xf32>
    %62 = arith.addf %59, %61 : vector<16x32xf32>
    %cst_23 = arith.constant 0.000000e+00 : f32
    %63 = vector.broadcast %cst_23 : f32 to vector<16x32xf32>
    %64 = arith.maximumf %62, %63 : vector<16x32xf32>
    %65 = vector.shape_cast %64 : vector<16x32xf32> to vector<1x4x128xf32>
    %c0_24 = arith.constant 0 : index
    %c0_25 = arith.constant 0 : index
    %c0_26 = arith.constant 0 : index
    %66 = vector.load %arg6[%c0_24, %c0_25, %c0_26] : memref<1x4x128xf32, #tpu.memory_space<vmem>>, vector<1x4x128xf32>
    tpu.vector_store %arg6[%c0_24, %c0_25, %c0_26], %65 {strides = array<i32>} : memref<1x4x128xf32, #tpu.memory_space<vmem>>, vector<1x4x128xf32>,
    return
  }
  func.func @transform_0(%arg0: i32) -> (i32, i32, i32) {
    %c0_i32 = arith.constant 0 : i32
    %c0_i32_0 = arith.constant 0 : i32
    %c0_i32_1 = arith.constant 0 : i32
    return %arg0, %c0_i32, %c0_i32_0 : i32, i32, i32
  }
  func.func @transform_1(%arg0: i32) -> (i32, i32) {
    %c0_i32 = arith.constant 0 : i32
    %c0_i32_0 = arith.constant 0 : i32
    %c0_i32_1 = arith.constant 0 : i32
    return %c0_i32, %c0_i32_0 : i32, i32
  }
  func.func @transform_2(%arg0: i32) -> (i32, i32) {
    %c0_i32 = arith.constant 0 : i32
    %c0_i32_0 = arith.constant 0 : i32
    %c0_i32_1 = arith.constant 0 : i32
    return %c0_i32, %c0_i32_0 : i32, i32
  }
  func.func @transform_3(%arg0: i32) -> (i32, i32) {
    %c0_i32 = arith.constant 0 : i32
    %c0_i32_0 = arith.constant 0 : i32
    %c0_i32_1 = arith.constant 0 : i32
    return %c0_i32, %c0_i32_0 : i32, i32
  }
  func.func @transform_4(%arg0: i32) -> (i32, i32) {
    %c0_i32 = arith.constant 0 : i32
    %c0_i32_0 = arith.constant 0 : i32
    %c0_i32_1 = arith.constant 0 : i32
    return %c0_i32, %c0_i32_0 : i32, i32
  }
  func.func @transform_5(%arg0: i32) -> (i32, i32, i32) {
    %c0_i32 = arith.constant 0 : i32
    %c0_i32_0 = arith.constant 0 : i32
    %c0_i32_1 = arith.constant 0 : i32
    return %arg0, %c0_i32, %c0_i32_0 : i32, i32, i32
  }
}

module attributes {stable_mosaic.version = 11 : i64} {
  func.func @_predictor_kernel(%arg0: i32, %arg1: memref<1x16x32xf32, #tpu.memory_space<vmem>>, %arg2: memref<32x96xf32, #tpu.memory_space<vmem>>, %arg3: memref<1x32xf32, #tpu.memory_space<vmem>>, %arg4: memref<1x32xf32, #tpu.memory_space<vmem>>, %arg5: memref<1x32xf32, #tpu.memory_space<vmem>>, %arg6: memref<1x16x32xf32, #tpu.memory_space<vmem>>) attributes {dimension_semantics = [#tpu.dimension_semantics<parallel>], iteration_bounds = array<i64: 2>, scalar_prefetch = 0 : i64, scratch_operands = 0 : i64, tpu.core_type = #tpu.core_type<tc>, window_params = [{transform_indices = @transform_0, window_bounds = array<i64: 1, 16, 32>}, {pipeline_mode = #tpu.pipeline_mode<synchronous>, transform_indices = @transform_1, window_bounds = array<i64: 32, 96>}, {pipeline_mode = #tpu.pipeline_mode<synchronous>, transform_indices = @transform_2, window_bounds = array<i64: 1, 32>}, {pipeline_mode = #tpu.pipeline_mode<synchronous>, transform_indices = @transform_3, window_bounds = array<i64: 1, 32>}, {pipeline_mode = #tpu.pipeline_mode<synchronous>, transform_indices = @transform_4, window_bounds = array<i64: 1, 32>}, {transform_indices = @transform_5, window_bounds = array<i64: 1, 16, 32>}]} {
    %c0 = arith.constant 0 : index
    %c0_0 = arith.constant 0 : index
    %c0_1 = arith.constant 0 : index
    %0 = vector.load %arg1[%c0, %c0_0, %c0_1] : memref<1x16x32xf32, #tpu.memory_space<vmem>>, vector<1x16x32xf32>
    %1 = vector.shape_cast %0 : vector<1x16x32xf32> to vector<16x32xf32>
    %c0_2 = arith.constant 0 : index
    %c0_3 = arith.constant 0 : index
    %2 = vector.load %arg2[%c0_2, %c0_3] : memref<32x96xf32, #tpu.memory_space<vmem>>, vector<32x96xf32>
    %cst = arith.constant dense<0.000000e+00> : vector<16x96xf32>
    %3 = tpu.matmul %1, %2, %cst {dimension_numbers = #tpu.dot_dimension_numbers<[1], [0], [0], [1], [0, 0, 1, 1], [], []>} : vector<16x32xf32>, vector<32x96xf32>, vector<16x96xf32> -> vector<16x96xf32>
    %4 = tpu.iota {dimensions = array<i32: 0>} : vector<16x32xi32>
    %c16_i32 = arith.constant 16 : i32
    %c0_i32 = arith.constant 0 : i32
    %5 = arith.cmpi eq, %c16_i32, %c0_i32 : i32
    %c1_i32 = arith.constant 1 : i32
    %6 = arith.select %5, %c1_i32, %c16_i32 : i32
    %7 = vector.broadcast %6 : i32 to vector<16x32xi32>
    %8 = arith.remsi %4, %7 : vector<16x32xi32>
    %c0_i32_4 = arith.constant 0 : i32
    %9 = vector.broadcast %c0_i32_4 : i32 to vector<16x32xi32>
    %10 = arith.cmpi ne, %8, %9 : vector<16x32xi32>
    %c0_i32_5 = arith.constant 0 : i32
    %11 = vector.broadcast %c0_i32_5 : i32 to vector<16x32xi32>
    %12 = arith.cmpi slt, %8, %11 : vector<16x32xi32>
    %c0_i32_6 = arith.constant 0 : i32
    %13 = arith.cmpi slt, %6, %c0_i32_6 : i32
    %14 = vector.broadcast %13 : i1 to vector<16x32xi1>
    %15 = vector.broadcast %14 : vector<16x32xi1> to vector<16x32xi1>
    %16 = arith.xori %12, %15 : vector<16x32xi1>
    %17 = arith.andi %16, %10 : vector<16x32xi1>
    %18 = vector.broadcast %6 : i32 to vector<16x32xi32>
    %19 = arith.addi %8, %18 : vector<16x32xi32>
    %20 = arith.select %17, %19, %8 : vector<16x32xi1>, vector<16x32xi32>
    %cst_7 = arith.constant 0.000000e+00 : f32
    %21 = vector.broadcast %cst_7 : f32 to vector<16x32xf32>
    %22 = vector.extract_strided_slice %3 {offsets = [0, 0], sizes = [16, 32], strides = [1, 1]} : vector<16x96xf32> to vector<16x32xf32>
    %c1_i32_8 = arith.constant 1 : i32
    %23 = tpu.dynamic_rotate %22 by %c1_i32_8 dim 0 : vector<16x32xf32>, i32 -> vector<16x32xf32>
    %c1_i32_9 = arith.constant 1 : i32
    %24 = vector.broadcast %c1_i32_9 : i32 to vector<16x32xi32>
    %25 = arith.cmpi sge, %20, %24 : vector<16x32xi32>
    %cst_10 = arith.constant 0.000000e+00 : f32
    %26 = vector.broadcast %cst_10 : f32 to vector<16x32xf32>
    %27 = arith.select %25, %23, %26 : vector<16x32xi1>, vector<16x32xf32>
    %28 = arith.addf %21, %27 : vector<16x32xf32>
    %29 = vector.extract_strided_slice %3 {offsets = [0, 32], sizes = [16, 32], strides = [1, 1]} : vector<16x96xf32> to vector<16x32xf32>
    %30 = arith.addf %28, %29 : vector<16x32xf32>
    %31 = vector.extract_strided_slice %3 {offsets = [0, 64], sizes = [16, 32], strides = [1, 1]} : vector<16x96xf32> to vector<16x32xf32>
    %c15_i32 = arith.constant 15 : i32
    %32 = tpu.dynamic_rotate %31 by %c15_i32 dim 0 : vector<16x32xf32>, i32 -> vector<16x32xf32>
    %c14_i32 = arith.constant 14 : i32
    %33 = vector.broadcast %c14_i32 : i32 to vector<16x32xi32>
    %34 = arith.cmpi sle, %20, %33 : vector<16x32xi32>
    %cst_11 = arith.constant 0.000000e+00 : f32
    %35 = vector.broadcast %cst_11 : f32 to vector<16x32xf32>
    %36 = arith.select %34, %32, %35 : vector<16x32xi1>, vector<16x32xf32>
    %37 = arith.addf %30, %36 : vector<16x32xf32>
    %c0_12 = arith.constant 0 : index
    %c0_13 = arith.constant 0 : index
    %38 = vector.load %arg3[%c0_12, %c0_13] : memref<1x32xf32, #tpu.memory_space<vmem>>, vector<1x32xf32>
    %39 = vector.broadcast %38 : vector<1x32xf32> to vector<16x32xf32>
    %40 = arith.addf %37, %39 : vector<16x32xf32>
    %cst_14 = arith.constant dense<0.000000e+00> : vector<16xf32>
    %41 = vector.multi_reduction <add>, %40, %cst_14 [1] : vector<16x32xf32> to vector<16xf32>
    %42 = vector.shape_cast %41 : vector<16xf32> to vector<16x1xf32>
    %cst_15 = arith.constant 3.200000e+01 : f32
    %43 = vector.broadcast %cst_15 : f32 to vector<16x1xf32>
    %44 = arith.divf %42, %43 : vector<16x1xf32>
    %45 = vector.broadcast %44 : vector<16x1xf32> to vector<16x32xf32>
    %46 = arith.subf %40, %45 : vector<16x32xf32>
    %47 = arith.mulf %46, %46 : vector<16x32xf32>
    %cst_16 = arith.constant dense<0.000000e+00> : vector<16xf32>
    %48 = vector.multi_reduction <add>, %47, %cst_16 [1] : vector<16x32xf32> to vector<16xf32>
    %49 = vector.shape_cast %48 : vector<16xf32> to vector<16x1xf32>
    %cst_17 = arith.constant 3.200000e+01 : f32
    %50 = vector.broadcast %cst_17 : f32 to vector<16x1xf32>
    %51 = arith.divf %49, %50 : vector<16x1xf32>
    %cst_18 = arith.constant 9.99999974E-6 : f32
    %52 = vector.broadcast %cst_18 : f32 to vector<16x1xf32>
    %53 = arith.addf %51, %52 : vector<16x1xf32>
    %54 = math.rsqrt %53 : vector<16x1xf32>
    %55 = vector.broadcast %54 : vector<16x1xf32> to vector<16x32xf32>
    %56 = arith.mulf %46, %55 : vector<16x32xf32>
    %c0_19 = arith.constant 0 : index
    %c0_20 = arith.constant 0 : index
    %57 = vector.load %arg4[%c0_19, %c0_20] : memref<1x32xf32, #tpu.memory_space<vmem>>, vector<1x32xf32>
    %58 = vector.broadcast %57 : vector<1x32xf32> to vector<16x32xf32>
    %59 = arith.mulf %56, %58 : vector<16x32xf32>
    %c0_21 = arith.constant 0 : index
    %c0_22 = arith.constant 0 : index
    %60 = vector.load %arg5[%c0_21, %c0_22] : memref<1x32xf32, #tpu.memory_space<vmem>>, vector<1x32xf32>
    %61 = vector.broadcast %60 : vector<1x32xf32> to vector<16x32xf32>
    %62 = arith.addf %59, %61 : vector<16x32xf32>
    %cst_23 = arith.constant 0.000000e+00 : f32
    %63 = vector.broadcast %cst_23 : f32 to vector<16x32xf32>
    %64 = arith.maximumf %62, %63 : vector<16x32xf32>
    %65 = vector.shape_cast %64 : vector<16x32xf32> to vector<1x16x32xf32>
    %c0_24 = arith.constant 0 : index
    %c0_25 = arith.constant 0 : index
    %c0_26 = arith.constant 0 : index
    %66 = vector.load %arg6[%c0_24, %c0_25, %c0_26] : memref<1x16x32xf32, #tpu.memory_space<vmem>>, vector<1x16x32xf32>
    tpu.vector_store %arg6[%c0_24, %c0_25, %c0_26], %65 {strides = array<i32>} : memref<1x16x32xf32, #tpu.memory_space<vmem>>, vector<1x16x32xf32>,
    return
  }
  func.func @transform_0(%arg0: i32) -> (i32, i32, i32) {
    %c0_i32 = arith.constant 0 : i32
    %c0_i32_0 = arith.constant 0 : i32
    %c0_i32_1 = arith.constant 0 : i32
    return %arg0, %c0_i32, %c0_i32_0 : i32, i32, i32
  }
  func.func @transform_1(%arg0: i32) -> (i32, i32) {
    %c0_i32 = arith.constant 0 : i32
    %c0_i32_0 = arith.constant 0 : i32
    %c0_i32_1 = arith.constant 0 : i32
    return %c0_i32, %c0_i32_0 : i32, i32
  }
  func.func @transform_2(%arg0: i32) -> (i32, i32) {
    %c0_i32 = arith.constant 0 : i32
    %c0_i32_0 = arith.constant 0 : i32
    %c0_i32_1 = arith.constant 0 : i32
    return %c0_i32, %c0_i32_0 : i32, i32
  }
  func.func @transform_3(%arg0: i32) -> (i32, i32) {
    %c0_i32 = arith.constant 0 : i32
    %c0_i32_0 = arith.constant 0 : i32
    %c0_i32_1 = arith.constant 0 : i32
    return %c0_i32, %c0_i32_0 : i32, i32
  }
  func.func @transform_4(%arg0: i32) -> (i32, i32) {
    %c0_i32 = arith.constant 0 : i32
    %c0_i32_0 = arith.constant 0 : i32
    %c0_i32_1 = arith.constant 0 : i32
    return %c0_i32, %c0_i32_0 : i32, i32
  }
  func.func @transform_5(%arg0: i32) -> (i32, i32, i32) {
    %c0_i32 = arith.constant 0 : i32
    %c0_i32_0 = arith.constant 0 : i32
    %c0_i32_1 = arith.constant 0 : i32
    return %arg0, %c0_i32, %c0_i32_0 : i32, i32, i32
  }
}

</mosaic_0001>

<llo_original>
// kernel: tpu_custom_call.1
$region0: #{tpu_custom_call.1}
  #allocation0 [shape = 'u32[]', space=smem, size = 0x4, offset = 0x4, fixed_abs, tag = 'smem constant byte address 0x4 - core index']
  #allocation1 [shape = 'u32[144,128]{1,0:T(1,128)}', space=vmem, size = 0x12000, scoped, tag = 'internal scratch']
  %s0 = inlined_call_operand.hbm [shape: f32[2,16,32], index: 0, kind: input, shape index: {}]
  %s1 = inlined_call_operand.hbm [shape: f32[32,96], index: 1, kind: input, shape index: {}]
  %s2 = inlined_call_operand.vmem [shape: f32[1,32], index: 2, kind: input, shape index: {}]
  %s3 = inlined_call_operand.vmem [shape: f32[1,32], index: 3, kind: input, shape index: {}]
  %s4 = inlined_call_operand.vmem [shape: f32[1,32], index: 4, kind: input, shape index: {}]
  %s5 = inlined_call_operand.hbm [shape: f32[2,16,32], index: 5, kind: output, shape index: {}]
  %s6 = sld [smem:[#allocation0]]
  $region61: #{tpu_custom_call.1} parent=0
    _
  %s8 = ssub.s32 1, %s6
  %s9 = scalar_select 0, %s8, %s6
  $region1: #{tpu_custom_call.1} parent=0
    #allocation2 [shape = 'u8[16384]{0}', space=vmem, size = 0x4000, scoped, tag = 'input window, operand 0']
    #allocation3 [shape = 's32[2]{0}', space=sflag, size = 0x8, scoped, tag = 'scoped memory for tpu_custom_call.1']
    #allocation4 [shape = 's32[2]{0}', space=sflag, size = 0x8, scoped, tag = 'scoped memory for tpu_custom_call.1']
    #allocation5 [shape = 'u8[16384]{0}', space=vmem, size = 0x4000, scoped, tag = 'input window, operand 1, single buffered']
    #allocation6 [shape = 's32[1]{0}', space=sflag, size = 0x4, scoped, tag = 'scoped memory for tpu_custom_call.1']
    #allocation7 [shape = 'u8[16384]{0}', space=vmem, size = 0x4000, scoped, tag = 'output window, operand 0']
    %10 = vsyncpa [#allocation3], 0
    %s11 = scalar_lea.sflag [#allocation3], 1
    %12 = vsyncpa %s11, 0
    %13 = vsyncpa [#allocation6], 0
    %14 = vsyncpa [#allocation4], 0
    %s15 = scalar_lea.sflag [#allocation4], 1
    %16 = vsyncpa %s15, 0
    loop: start=0, step=1, limit=4
    $region2: #{tpu_custom_call.1} parent=1 // loop_pre_header
      _
    $region3: #{tpu_custom_call.1} parent=1 // loop_header
      %s18 = sphi 0, %s22
      %p19 = scmp.ge.s32.totalorder %s18, 4
      %s28 = sphi 0, %s30
      %s31 = sphi 0, %s28
      %s32 = sphi 0, %s31
      %s48 = sphi 0, %s32
      %s52 = sphi 0, %s52
      %s54 = sphi 0, %s52
      %s55 = sphi 0, %s54
      %s69 = sphi 0, %s55
      %s73 = sphi 0, %s73
      %s75 = sphi 0, %s73
      %s76 = sphi 0, %s75
      %s90 = sphi 0, %s76
      %s94 = sphi 0, %s94
      %s96 = sphi 0, %s94
      %s97 = sphi 0, %s96
      %s111 = sphi 0, %s97
      %s115 = sphi 0, %s115
      %s117 = sphi 0, %s115
      %s118 = sphi 0, %s117
      %s132 = sphi 0, %s118
      %s138 = sphi 0, %s140
      %s141 = sphi 0, %s138
      %s142 = sphi 0, %s141
      %s158 = sphi 0, %s142
    $region4: #{tpu_custom_call.1} parent=1 // loop_header_branch
      %21 = sbr.rel (%p19) target = $region8
    $region5: #{tpu_custom_call.1} parent=1 // loop_body
      %s23 = ssub.s32 %s18, 1
      %s24 = ssub.s32 %s18, 2
      %s25 = sadd.s32 %s18, 1
      %s26 = ssub.s32 %s18, %s25
      %p27 = scmp.eq.s32.totalorder %s26, 0
      %s29 = sadd.s32 %s28, 1
      %s30 = scalar_select %p27, %s28, %s29
      %p33 = pneg %p27
      %p34 = scmp.eq.s32.totalorder %s18, 1
      %p35 = por %p33, %p34
      %p36 = scmp.ne.s32.totalorder %s28, %s31
      %p37 = scmp.eq.s32.totalorder %s18, 0
      %p38 = por %p36, %p37
      %p39 = scmp.ne.s32.totalorder %s28, %s31
      %p40 = scmp.eq.s32.totalorder %s23, 1
      %p41 = por %p39, %p40
      %p42 = scmp.ne.s32.totalorder %s31, %s32
      %p43 = scmp.eq.s32.totalorder %s23, 0
      %p44 = por %p42, %p43
      %p45 = scmp.ne.s32.totalorder %s31, %s32
      %p46 = scmp.eq.s32.totalorder %s24, 1
      %p47 = por %p45, %p46
      %p49 = scmp.ne.s32.totalorder %s32, %s48
      %p50 = scmp.eq.s32.totalorder %s24, 0
      %p51 = por %p49, %p50
      %s53 = sadd.s32 %s52, 1
      %p56 = scmp.eq.s32.totalorder %s18, 1
      %p57 = scmp.ne.s32.totalorder %s52, %s54
      %p58 = scmp.eq.s32.totalorder %s18, 0
      %p59 = por %p57, %p58
      %p60 = scmp.ne.s32.totalorder %s52, %s54
      %p61 = scmp.eq.s32.totalorder %s23, 1
      %p62 = por %p60, %p61
      %p63 = scmp.ne.s32.totalorder %s54, %s55
      %p64 = scmp.eq.s32.totalorder %s23, 0
      %p65 = por %p63, %p64
      %p66 = scmp.ne.s32.totalorder %s54, %s55
      %p67 = scmp.eq.s32.totalorder %s24, 1
      %p68 = por %p66, %p67
      %p70 = scmp.ne.s32.totalorder %s55, %s69
      %p71 = scmp.eq.s32.totalorder %s24, 0
      %p72 = por %p70, %p71
      %s74 = sadd.s32 %s73, 1
      %p77 = scmp.eq.s32.totalorder %s18, 1
      %p78 = scmp.ne.s32.totalorder %s73, %s75
      %p79 = scmp.eq.s32.totalorder %s18, 0
      %p80 = por %p78, %p79
      %p81 = scmp.ne.s32.totalorder %s73, %s75
      %p82 = scmp.eq.s32.totalorder %s23, 1
      %p83 = por %p81, %p82
      %p84 = scmp.ne.s32.totalorder %s75, %s76
      %p85 = scmp.eq.s32.totalorder %s23, 0
      %p86 = por %p84, %p85
      %p87 = scmp.ne.s32.totalorder %s75, %s76
      %p88 = scmp.eq.s32.totalorder %s24, 1
      %p89 = por %p87, %p88
      %p91 = scmp.ne.s32.totalorder %s76, %s90
      %p92 = scmp.eq.s32.totalorder %s24, 0
      %p93 = por %p91, %p92
      %s95 = sadd.s32 %s94, 1
      %p98 = scmp.eq.s32.totalorder %s18, 1
      %p99 = scmp.ne.s32.totalorder %s94, %s96
      %p100 = scmp.eq.s32.totalorder %s18, 0
      %p101 = por %p99, %p100
      %p102 = scmp.ne.s32.totalorder %s94, %s96
      %p103 = scmp.eq.s32.totalorder %s23, 1
      %p104 = por %p102, %p103
      %p105 = scmp.ne.s32.totalorder %s96, %s97
      %p106 = scmp.eq.s32.totalorder %s23, 0
      %p107 = por %p105, %p106
      %p108 = scmp.ne.s32.totalorder %s96, %s97
      %p109 = scmp.eq.s32.totalorder %s24, 1
      %p110 = por %p108, %p109
      %p112 = scmp.ne.s32.totalorder %s97, %s111
      %p113 = scmp.eq.s32.totalorder %s24, 0
      %p114 = por %p112, %p113
      %s116 = sadd.s32 %s115, 1
      %p119 = scmp.eq.s32.totalorder %s18, 1
      %p120 = scmp.ne.s32.totalorder %s115, %s117
      %p121 = scmp.eq.s32.totalorder %s18, 0
      %p122 = por %p120, %p121
      %p123 = scmp.ne.s32.totalorder %s115, %s117
      %p124 = scmp.eq.s32.totalorder %s23, 1
      %p125 = por %p123, %p124
      %p126 = scmp.ne.s32.totalorder %s117, %s118
      %p127 = scmp.eq.s32.totalorder %s23, 0
      %p128 = por %p126, %p127
      %p129 = scmp.ne.s32.totalorder %s117, %s118
      %p130 = scmp.eq.s32.totalorder %s24, 1
      %p131 = por %p129, %p130
      %p133 = scmp.ne.s32.totalorder %s118, %s132
      %p134 = scmp.eq.s32.totalorder %s24, 0
      %p135 = por %p133, %p134
      %s136 = ssub.s32 %s18, %s25
      %p137 = scmp.eq.s32.totalorder %s136, 0
      %s139 = sadd.s32 %s138, 1
      %s140 = scalar_select %p137, %s138, %s139
      %p143 = pneg %p137
      %p144 = scmp.eq.s32.totalorder %s18, 1
      %p145 = por %p143, %p144
      %p146 = scmp.ne.s32.totalorder %s138, %s141
      %p147 = scmp.eq.s32.totalorder %s18, 0
      %p148 = por %p146, %p147
      %p149 = scmp.ne.s32.totalorder %s138, %s141
      %p150 = scmp.eq.s32.totalorder %s23, 1
      %p151 = por %p149, %p150
      %p152 = scmp.ne.s32.totalorder %s141, %s142
      %p153 = scmp.eq.s32.totalorder %s23, 0
      %p154 = por %p152, %p153
      %p155 = scmp.ne.s32.totalorder %s141, %s142
      %p156 = scmp.eq.s32.totalorder %s24, 1
      %p157 = por %p155, %p156
      %p159 = scmp.ne.s32.totalorder %s142, %s158
      %p160 = scmp.eq.s32.totalorder %s24, 0
      %p161 = por %p159, %p160
      %p162 = scmp.le.s32.totalorder 1, %s18
      %p163 = scmp.lt.s32.totalorder %s18, 3
      %p164 = pnand %p162, %p163
      %p165 = pneg %p164
      // Predicated region
      $region9: #{tpu_custom_call.1} parent=5 // pred_check
        _
      $region10: #{tpu_custom_call.1} parent=5 // pred_check_branch
        %167 = sbr.rel (%p164) target = $region12
      $region11: #{tpu_custom_call.1} parent=5 // pred_region
        %s168 = ssub.s32 %s18, 1
        // Predicated region
        $region13: #{tpu_custom_call.1} parent=11 // pred_check
          %p169 = pneg %p65
        $region14: #{tpu_custom_call.1} parent=11 // pred_check_branch
          %171 = sbr.rel (%p169) target = $region16
        $region15: #{tpu_custom_call.1} parent=11 // pred_region
          %s173 = ssub.s32 512, 512
          %174 = vsyncadd [#allocation6], %s173
          %s175 = sshll.u32 [#allocation5], 4
          %s176 = int_to_ptr.vmem [resolvable:$true] %s175
          %181 = dma.hbm_to_vmem [thread:$0]  %s1, 512, %s176, [#allocation6], 128, 128, 8
        $region16: #{tpu_custom_call.1} parent=11 // pred_fallthru
          _
        // Predicated region
        $region17: #{tpu_custom_call.1} parent=11 // pred_check
          %p182 = pneg %p86
        $region18: #{tpu_custom_call.1} parent=11 // pred_check_branch
          %184 = sbr.rel (%p182) target = $region20
        $region19: #{tpu_custom_call.1} parent=11 // pred_region
          _
        $region20: #{tpu_custom_call.1} parent=11 // pred_fallthru
          _
        // Predicated region
        $region21: #{tpu_custom_call.1} parent=11 // pred_check
          %p185 = pneg %p107
        $region22: #{tpu_custom_call.1} parent=11 // pred_check_branch
          %187 = sbr.rel (%p185) target = $region24
        $region23: #{tpu_custom_call.1} parent=11 // pred_region
          _
        $region24: #{tpu_custom_call.1} parent=11 // pred_fallthru
          _
        // Predicated region
        $region25: #{tpu_custom_call.1} parent=11 // pred_check
          %p188 = pneg %p128
        $region26: #{tpu_custom_call.1} parent=11 // pred_check_branch
          %190 = sbr.rel (%p188) target = $region28
        $region27: #{tpu_custom_call.1} parent=11 // pred_region
          _
        $region28: #{tpu_custom_call.1} parent=11 // pred_fallthru
          _
      $region12: #{tpu_custom_call.1} parent=5 // pred_fallthru
        _
      %p191 = scmp.lt.s32.totalorder %s18, 2
      // Predicated region
      $region29: #{tpu_custom_call.1} parent=5 // pred_check
        %p192 = pneg %p191
      $region30: #{tpu_custom_call.1} parent=5 // pred_check_branch
        %194 = sbr.rel (%p192) target = $region32
      $region31: #{tpu_custom_call.1} parent=5 // pred_region
        // Predicated region
        $region33: #{tpu_custom_call.1} parent=31 // pred_check
          %p195 = pneg %p38
        $region34: #{tpu_custom_call.1} parent=31 // pred_check_branch
          %197 = sbr.rel (%p195) target = $region36
        $region35: #{tpu_custom_call.1} parent=31 // pred_region
          %s198 = sand.u32 %s28, 1
          %s199 = scalar_lea.sflag [#allocation3], %s198
          %s200 = sand.u32 %s28, 1
          %s201 = smul.addr %s200, 16
          %s202 = scalar_lea.vmem [#allocation2], %s201
          %s204 = ssub.s32 256, 256
          %205 = vsyncadd %s199, %s204
          %s206 = smul.addr %s18, 2
          %s207 = smul.addr %s206, 128
          %s208 = scalar_lea.hbm %s0, %s207
          %s209 = sshll.u32 %s202, 4
          %s210 = int_to_ptr.vmem [resolvable:$true] %s209
          %215 = dma.hbm_to_vmem [thread:$0]  %s208, 256, %s210, %s199, 128, 128, 8
        $region36: #{tpu_custom_call.1} parent=31 // pred_fallthru
          _
      $region32: #{tpu_custom_call.1} parent=5 // pred_fallthru
        _
      %p216 = scmp.le.s32.totalorder 1, %s18
      %p217 = scmp.lt.s32.totalorder %s18, 3
      %p218 = pnand %p216, %p217
      %p219 = pneg %p218
      // Predicated region
      $region37: #{tpu_custom_call.1} parent=5 // pred_check
        _
      $region38: #{tpu_custom_call.1} parent=5 // pred_check_branch
        %221 = sbr.rel (%p218) target = $region40
      $region39: #{tpu_custom_call.1} parent=5 // pred_region
        %s222 = ssub.s32 %s18, 1
        %s223 = sand.u32 %s31, 1
        %s224 = scalar_lea.sflag [#allocation3], %s223
        %s225 = sand.u32 %s31, 1
        %s226 = smul.addr %s225, 16
        %s227 = scalar_lea.vmem [#allocation2], %s226
        // Predicated region
        $region41: #{tpu_custom_call.1} parent=39 // pred_check
          %p228 = pneg %p44
        $region42: #{tpu_custom_call.1} parent=39 // pred_check_branch
          %230 = sbr.rel (%p228) target = $region44
        $region43: #{tpu_custom_call.1} parent=39 // pred_region
          %231 = dma.done %s224, 256
        $region44: #{tpu_custom_call.1} parent=39 // pred_fallthru
          _
        // Predicated region
        $region45: #{tpu_custom_call.1} parent=39 // pred_check
          %p232 = pneg %p65
        $region46: #{tpu_custom_call.1} parent=39 // pred_check_branch
          %234 = sbr.rel (%p232) target = $region48
        $region47: #{tpu_custom_call.1} parent=39 // pred_region
          %235 = dma.done [#allocation6], 512
        $region48: #{tpu_custom_call.1} parent=39 // pred_fallthru
          _
        %s236 = sand.u32 %s31, 1
        %s237 = scalar_lea.sflag [#allocation3], %s236
        %s238 = sand.u32 %s31, 1
        %s239 = smul.addr %s238, 16
        %s240 = scalar_lea.vmem [#allocation2], %s239
        %p241 = pneg %p44
        %p242 = pneg %p41
        %p243 = pneg %p65
        %p244 = pneg %p62
        %p245 = pneg %p86
        %p246 = pneg %p83
        %p247 = pneg %p107
        %p248 = pneg %p104
        %p249 = pneg %p128
        %p250 = pneg %p125
        %p251 = pneg %p154
        %p252 = pneg %p151
        %s253 = sand.u32 %s141, 1
        %s254 = scalar_lea.sflag [#allocation4], %s253
        %s255 = sand.u32 %s141, 1
        %s256 = smul.addr %s255, 16
        %s257 = scalar_lea.vmem [#allocation7], %s256
        %v258 = vld [vmem:[%s227] sm:$0xff]
        %v259 = vld [vmem:[%s227 + $0x8] sm:$0xff]
        %v260 = vld [vmem:[#allocation5] sm:$0xff]
        %v261 = vld [vmem:[#allocation5 + $0x8] sm:$0xff]
        %v262 = vld [vmem:[#allocation5 + $0x10] sm:$0xff]
        %v263 = vld [vmem:[#allocation5 + $0x18] sm:$0xff]
        %vm264 = vcmask 261120
        %v266 = vsel %vm264, %v258, 0
        %v269 = vsel %vm264, %v259, 0
        %271 = vmatprep.subr.mxu0 0.0
        %272 = vmatpush1.msra.mxu0 %v260
        %273 = vmatprep.subr.mxu0 0.0
        %274 = vmatpush1.msra.mxu0 %v261
        %275 = vmatprep.subr.mxu0 0.0
        %276 = vmatpush1.msra.mxu0 %v262
        %277 = vmatprep.subr.mxu0 0.0
        %278 = vmatpush1.msra.mxu0 %v263
        %279 = vmatprep.subr.mxu0 0.0
        %280 = vmatpush1.msra.mxu0 0.0
        %281 = vmatprep.subr.mxu0 0.0
        %282 = vmatpush1.msra.mxu0 0.0
        %283 = vmatprep.subr.mxu0 0.0
        %284 = vmatpush1.msra.mxu0 0.0
        %285 = vmatprep.subr.mxu0 0.0
        %286 = vmatpush1.msra.mxu0 0.0
        %287 = vmatprep.subr.mxu0 0.0
        %288 = vmatpush1.msra.mxu0 0.0
        %289 = vmatprep.subr.mxu0 0.0
        %290 = vmatpush1.msra.mxu0 0.0
        %291 = vmatprep.subr.mxu0 0.0
        %292 = vmatpush1.msra.mxu0 0.0
        %293 = vmatprep.subr.mxu0 0.0
        %294 = vmatpush1.msra.mxu0 0.0
        %295 = vmatprep.subr.mxu0 0.0
        %296 = vmatpush1.msra.mxu0 0.0
        %297 = vmatprep.subr.mxu0 0.0
        %298 = vmatpush1.msra.mxu0 0.0
        %299 = vmatprep.subr.mxu0 0.0
        %300 = vmatpush1.msra.mxu0 0.0
        %301 = vmatprep.subr.mxu0 0.0
        %302 = vmatpush1.msra.mxu0 0.0
        %303 = vmatprep.subr.mxu0 0.0
        %304 = vmatpush1.msra.mxu0 0.0
        %305 = vmatprep.subr.mxu0 0.0
        %306 = vmatpush1.msra.mxu0 0.0
        %307 = vmatprep.subr.mxu0 0.0
        %308 = vmatpush1.msra.mxu0 0.0
        %309 = vmatprep.subr.mxu0 0.0
        %310 = vmatpush1.msra.mxu0 0.0
        %311 = vmatprep.subr.mxu0 0.0
        %312 = vmatpush1.msra.mxu0 0.0
        %313 = vmatprep.subr.mxu0 0.0
        %314 = vmatpush1.msra.mxu0 0.0
        %315 = vmatprep.subr.mxu0 0.0
        %316 = vmatpush1.msra.mxu0 0.0
        %317 = vmatprep.subr.mxu0 0.0
        %318 = vmatpush1.msra.mxu0 0.0
        %319 = vmatprep.subr.mxu0 0.0
        %320 = vmatpush1.msra.mxu0 0.0
        %321 = vmatprep.subr.mxu0 0.0
        %322 = vmatpush1.msra.mxu0 0.0
        %323 = vmatprep.subr.mxu0 0.0
        %324 = vmatpush1.msra.mxu0 0.0
        %325 = vmatprep.subr.mxu0 0.0
        %326 = vmatpush1.msra.mxu0 0.0
        %327 = vmatprep.subr.mxu0 0.0
        %328 = vmatpush1.msra.mxu0 0.0
        %329 = vmatprep.subr.mxu0 0.0
        %330 = vmatpush1.msra.mxu0 0.0
        %331 = vmatprep.subr.mxu0 0.0
        %332 = vmatpush1.msra.mxu0 0.0
        %333 = vmatprep.subr.mxu0 0.0
        %334 = vmatpush1.msra.mxu0 0.0
        %335 = vmatprep.mubr.f32.mxu0 0.0
        %336 = vmatmul.mubr.f32.gmra.mrb[0].mxu0 %v266
        %v337 = vpop.f32.mrb[0].mxu0
        %v338 = vadd.f32 0.0, %v337
        %v339 = vpop.f32.mrb[0].mxu0
        %340 = vmatprep.mubr.f32.mxu0 0.0
        %341 = vmatmul.mubr.f32.gmra.mrb[0].mxu0 %v269
        %v342 = vpop.f32.mrb[0].mxu0
        %v343 = vadd.f32 0.0, %v342
        %v344 = vpop.f32.mrb[0].mxu0
        %345 = vdwg.mxu0
        %v346 = vlaneseq
        %v347 = vshrl.u32 %v346, 7
        %v348 = vadd.s32 %v347, 8
        %vm349 = vcmp.lt.s32.totalorder %v347, 0
        %v350 = vsub.s32 0, %v347
        %v351 = vsel %vm349, %v350, %v347
        %v352 = vshrl.u32 %v351, 4
        %v353 = vand.u32 %v351, 15
        %v354 = vsub.s32 0, %v353
        %v355 = vsel %vm349, %v354, %v353
        %vm356 = vcmp.lt.s32.totalorder %v348, 0
        %v357 = vsub.s32 0, %v348
        %v358 = vsel %vm356, %v357, %v348
        %v359 = vshrl.u32 %v358, 4
        %v360 = vand.u32 %v358, 15
        %v361 = vsub.s32 0, %v360
        %v362 = vsel %vm356, %v361, %v360
        %vm363 = vcmp.ne.s32.totalorder %v355, 0
        %vm364 = vcmp.ne.s32.totalorder %v362, 0
        %vm365 = vcmp.lt.s32.totalorder %v355, 0
        %vm366 = vcmp.lt.s32.totalorder %v362, 0
        %vm367 = vmand %vm365, %vm363
        %vm368 = vmand %vm366, %vm364
        %v369 = vadd.s32 %v355, 16
        %v370 = vadd.s32 %v362, 16
        %v371 = vsel %vm367, %v369, %v355
        %v372 = vsel %vm368, %v370, %v362
        %v373 = vrot.slane %v338, 7
        %v374 = vrot.slane %v343, 7
        %vm375 = vcmp.lt.s32.totalorder %v347, 1
        %v376 = vsel %vm375, %v373, %v374
        %v377 = vsel %vm375, %v374, %v373
        %vm378 = vcmp.ge.s32.totalorder %v371, 1
        %vm379 = vcmp.ge.s32.totalorder %v372, 1
        %v380 = vsel %vm378, %v377, 0.0
        %v381 = vsel %vm379, %v376, 0.0
        %v382 = vadd.f32 %v380, 0.0
        %v383 = vadd.f32 %v381, 0.0
        %386 = vrot.lane.b32.xlu0 %v338, 96
        %v387 = vpop.permute.xlu0 %386
        %388 = vrot.lane.b32.xlu0 %v343, 96
        %v389 = vpop.permute.xlu0 %388
        %v392 = vadd.f32 %v382, %v387
        %v393 = vadd.f32 %v383, %v389
        %394 = vrot.lane.b32.xlu0 %v338, 64
        %v395 = vpop.permute.xlu0 %394
        %396 = vrot.lane.b32.xlu0 %v343, 64
        %v397 = vpop.permute.xlu0 %396
        %v400 = vrot.slane %v395, 1
        %v401 = vrot.slane %v397, 1
        %vm402 = vcmp.lt.s32.totalorder %v347, 7
        %v403 = vsel %vm402, %v400, %v401
        %v404 = vsel %vm402, %v401, %v400
        %vm405 = vcmp.le.s32.totalorder %v371, 14
        %vm406 = vcmp.le.s32.totalorder %v372, 14
        %v407 = vsel %vm405, %v403, 0.0
        %v408 = vsel %vm406, %v404, 0.0
        %v409 = vadd.f32 %v392, %v407
        %v410 = vadd.f32 %v393, %v408
        %v411 = vld [vmem:[%s2] sm:$0x1]
        %v413 = vlaneseq
        %v414 = vshrl.u32 %v413, 7
        %v415 = vsub.s32 0, %v414
        %v416 = vrot.slane %v411, %v415
        %v418 = vadd.f32 %v409, %v416
        %v419 = vadd.f32 %v410, %v416
        %v420 = vsel %vm264, %v418, 0.0
        %421 = vadd.xlane.f32.xlu0 %v420
        %v422 = vpop.xlane.xlu0 %421
        %v423 = vsel %vm264, %v419, 0.0
        %424 = vadd.xlane.f32.xlu0 %v423
        %v425 = vpop.xlane.xlu0 %424
        %v426 = vrcp.pop 32.0
        %v427 = vmul.f32 %v422, %v426
        %v428 = vmul.f32 %v425, %v426
        %v429 = vsub.f32 %v418, %v427
        %v430 = vsub.f32 %v419, %v428
        %v431 = vmul.f32 %v429, %v429
        %v432 = vmul.f32 %v430, %v430
        %v433 = vsel %vm264, %v431, 0.0
        %434 = vadd.xlane.f32.xlu0 %v433
        %v435 = vpop.xlane.xlu0 %434
        %v436 = vsel %vm264, %v432, 0.0
        %437 = vadd.xlane.f32.xlu0 %v436
        %v438 = vpop.xlane.xlu0 %437
        %v439 = vmul.f32 %v435, %v426
        %v440 = vmul.f32 %v438, %v426
        %v441 = vadd.f32 %v439, 1e-05
        %v442 = vadd.f32 %v440, 1e-05
        %v443 = vrsqrt.pop %v441
        %v444 = vrsqrt.pop %v442
        %v445 = vmul.f32 %v429, %v443
        %v446 = vmul.f32 %v430, %v444
        %v447 = vld [vmem:[%s3] sm:$0x1]
        %v449 = vlaneseq
        %v450 = vshrl.u32 %v449, 7
        %v451 = vsub.s32 0, %v450
        %v452 = vrot.slane %v447, %v451
        %v454 = vmul.f32 %v445, %v452
        %v455 = vmul.f32 %v446, %v452
        %v456 = vld [vmem:[%s4] sm:$0x1]
        %v458 = vlaneseq
        %v459 = vshrl.u32 %v458, 7
        %v460 = vsub.s32 0, %v459
        %v461 = vrot.slane %v456, %v460
        %v463 = vadd.f32 %v454, %v461
        %v464 = vadd.f32 %v455, %v461
        %v465 = vmax.f32 %v463, 0.0
        %v466 = vmax.f32 %v464, 0.0
        %467 = vst.msk [vmem:[%s257] sm:$0xff] %vm264, %v465
        %468 = vst.msk [vmem:[%s257 + $0x8] sm:$0xff] %vm264, %v466
        %s469 = sand.u32 %s141, 1
        %s470 = scalar_lea.sflag [#allocation4], %s469
        %s471 = sand.u32 %s141, 1
        %s472 = smul.addr %s471, 16
        %s473 = scalar_lea.vmem [#allocation7], %s472
        // Predicated region
        $region49: #{tpu_custom_call.1} parent=39 // pred_check
          %p474 = pneg %p151
        $region50: #{tpu_custom_call.1} parent=39 // pred_check_branch
          %476 = sbr.rel (%p474) target = $region52
        $region51: #{tpu_custom_call.1} parent=39 // pred_region
          %s478 = ssub.s32 256, 256
          %479 = vsyncadd %s470, %s478
          %s480 = smul.addr %s23, 2
          %s481 = smul.addr %s480, 128
          %s482 = scalar_lea.hbm %s5, %s481
          %s483 = sshll.u32 %s473, 4
          %s484 = int_to_ptr.vmem [resolvable:$true] %s483
          %489 = dma.vmem_to_hbm [thread:$0]  %s484, 256, %s482, %s470, 128, 128, 8
        $region52: #{tpu_custom_call.1} parent=39 // pred_fallthru
          _
      $region40: #{tpu_custom_call.1} parent=5 // pred_fallthru
        _
      %p490 = scmp.le.s32.totalorder 2, %s18
      // Predicated region
      $region53: #{tpu_custom_call.1} parent=5 // pred_check
        %p491 = pneg %p490
      $region54: #{tpu_custom_call.1} parent=5 // pred_check_branch
        %493 = sbr.rel (%p491) target = $region56
      $region55: #{tpu_custom_call.1} parent=5 // pred_region
        %s494 = ssub.s32 %s18, 2
        // Predicated region
        $region57: #{tpu_custom_call.1} parent=55 // pred_check
          %p495 = pneg %p157
        $region58: #{tpu_custom_call.1} parent=55 // pred_check_branch
          %497 = sbr.rel (%p495) target = $region60
        $region59: #{tpu_custom_call.1} parent=55 // pred_region
          %s498 = sand.u32 %s142, 1
          %s499 = scalar_lea.sflag [#allocation4], %s498
          %s500 = sand.u32 %s142, 1
          %s501 = smul.addr %s500, 16
          %s502 = scalar_lea.vmem [#allocation7], %s501
          %503 = dma.done %s499, 256
        $region60: #{tpu_custom_call.1} parent=55 // pred_fallthru
          _
      $region56: #{tpu_custom_call.1} parent=5 // pred_fallthru
        _
    $region6: #{tpu_custom_call.1} parent=1 // loop_footer
      %s22 = sadd.s32 1, %s18
    $region7: #{tpu_custom_call.1} parent=1 // loop_footer_branch
      %17 = sbr.rel target = $region3
    $region8: #{tpu_custom_call.1} parent=1 // loop_exit
      _
    %504 = vsyncpa [#allocation3], 1
    %s505 = scalar_lea.sflag [#allocation3], 1
    %506 = vsyncpa %s505, 1
    %507 = vsyncpa [#allocation6], 1
    %508 = vsyncpa [#allocation4], 1
    %s509 = scalar_lea.sflag [#allocation4], 1
    %510 = vsyncpa %s509, 1

</llo_original>
